<compile_context>
chip_gen: v7x
topology: tpu7x:2x2x1
jax: 0.10.0
libtpu: 0.0.40
codegen_flags: <defaults>
</compile_context>

<pallas_src>
import functools

import jax
import jax.numpy as jnp
from jax.experimental import pallas as pl
from jax.experimental.pallas import tpu as pltpu


def _round_up(a, b):
    return (a + b - 1) // b * b


def _kipf_cheb_kernel(l_ref, x_ref, w_ref, b_ref, o_ref, slab_ref, *, K):
    """Grid = (max(K-1,1), n_row_tiles); step (kk, i) builds Tx_{kk+1} for tile i."""
    TN = o_ref.shape[0]
    i = pl.program_id(1)                       # node row tile
    row0 = pl.multiple_of(i * TN, 8)

    if K == 1:                                 # degenerate: out = relu(x @ W_0 + b)
        acc = jnp.dot(x_ref[pl.ds(row0, TN), :], w_ref[0],
                      preferred_element_type=jnp.float32)
        o_ref[...] = jnp.maximum(acc + b_ref[...], 0.0)
        return

    kk = pl.program_id(0)                      # Chebyshev step: produces Tx_{kk+1}

    # Seed slab[0] = Tx_0 = x for this row tile during the first k sweep.
    @pl.when(kk == 0)
    def _():
        slab_ref[0, pl.ds(row0, TN), :] = x_ref[pl.ds(row0, TN), :]

    # Tx_kk over ALL rows (matmul RHS). During the kk == 0 sweep slab[0] is
    # still being filled tile by tile, so read x directly instead.
    prev_full = jnp.where(kk == 0, x_ref[...], slab_ref[kk])           # (N, Fin) f32

    # Dominant work: bf16 row-tile sweep of L_hat on the MXU, f32 accumulation.
    t = jnp.dot(l_ref[...], prev_full.astype(jnp.bfloat16),
                preferred_element_type=jnp.float32)                    # (TN, Fin)

    prev2_tile = slab_ref[jnp.maximum(kk - 1, 0), pl.ds(row0, TN), :]
    t_new = jnp.where(kk == 0, t, 2.0 * t - prev2_tile)                # recurrence
    slab_ref[kk + 1, pl.ds(row0, TN), :] = t_new

    # Last k sweep: apply all K weight matmuls once per row tile, bias, ReLU.
    @pl.when(kk == K - 2)
    def _():
        acc = jnp.dot(slab_ref[0, pl.ds(row0, TN), :], w_ref[0],
                      preferred_element_type=jnp.float32)
        for k in range(1, K):                  # static unroll; tiny vs the L sweeps
            acc = acc + jnp.dot(slab_ref[k, pl.ds(row0, TN), :], w_ref[k],
                                preferred_element_type=jnp.float32)
        o_ref[...] = jnp.maximum(acc + b_ref[...], 0.0)


def kipfblock_forward(lhat, x, weight, bias):
    """lhat: (N,N), x: (N,Fin), weight: (K,Fin,H), bias: (H,) -> (N,H) float32."""
    N, Fin = x.shape
    K, _, H = weight.shape

    # ---- tile / pad geometry -------------------------------------------------
    TN = 512                                   # large row tiles amortize per-step overhead
    # keep the double-buffered bf16 L row tiles well under v7x's 64 MiB/TC VMEM
    while TN > 8 and 2 * TN * _round_up(N, TN) * 2 > (32 << 20):
        TN //= 2
    if N <= TN:
        TN = max(8, _round_up(N, 8))
    N_pad = _round_up(N, TN)
    H_pad = _round_up(H, 128)                  # lane-dense output stores
    n_tiles = N_pad // TN
    grid = (max(K - 1, 1), n_tiles)

    lhat_p = jnp.pad(lhat.astype(jnp.bfloat16), ((0, N_pad - N), (0, N_pad - N)))
    x_p = jnp.pad(x.astype(jnp.float32), ((0, N_pad - N), (0, 0)))
    w_p = jnp.pad(weight.astype(jnp.float32), ((0, 0), (0, 0), (0, H_pad - H)))
    b_p = jnp.pad(bias.astype(jnp.float32), (0, H_pad - H)).reshape(1, H_pad)

    vmem_bytes = int(
        2 * TN * N_pad * 2            # double-buffered bf16 L row tiles
        + 2 * TN * H_pad * 4          # double-buffered f32 output tiles
        + 2 * N_pad * Fin * 4         # x (resident)
        + 2 * K * Fin * H_pad * 4     # weights (resident)
        + 2 * H_pad * 4               # bias
        + K * N_pad * Fin * 4         # Chebyshev slab scratch
        + (4 << 20))                  # slack

    flops = 2 * max(K - 1, 1) * N_pad * N_pad * Fin + 2 * N_pad * K * Fin * H_pad
    bytes_accessed = (max(K - 1, 1) * N_pad * N_pad * 2 + N_pad * Fin * 4
                      + K * Fin * H_pad * 4 + N_pad * H_pad * 4)

    kernel = functools.partial(_kipf_cheb_kernel, K=K)

    out_p = pl.pallas_call(
        kernel,
        out_shape=jax.ShapeDtypeStruct((N_pad, H_pad), jnp.float32),
        grid_spec=pltpu.PrefetchScalarGridSpec(
            num_scalar_prefetch=0,
            grid=grid,
            in_specs=[
                pl.BlockSpec((TN, N_pad), lambda kk, i: (i, 0)),        # L_hat row tile
                pl.BlockSpec((N_pad, Fin), lambda kk, i: (0, 0)),       # x (full, resident)
                pl.BlockSpec((K, Fin, H_pad), lambda kk, i: (0, 0, 0)), # weights
                pl.BlockSpec((1, H_pad), lambda kk, i: (0, 0)),         # bias
            ],
            out_specs=pl.BlockSpec((TN, H_pad), lambda kk, i: (i, 0)),
            scratch_shapes=[pltpu.VMEM((K, N_pad, Fin), jnp.float32)],
        ),
        compiler_params=pltpu.CompilerParams(
            # k carries the recurrence; row tiles fill a core-private scratch
            # slab that later k sweeps read in full -> both 'arbitrary'.
            dimension_semantics=("arbitrary", "arbitrary"),
            vmem_limit_bytes=vmem_bytes,
        ),
        cost_estimate=pl.CostEstimate(flops=flops, transcendentals=0,
                                      bytes_accessed=bytes_accessed),
    )(lhat_p, x_p, w_p, b_p)

    return out_p[:N, :H]


def scaled_laplacian(edge_index, num_nodes):
    """Dense L_hat = -D^{-1/2} A D^{-1/2} (ChebConv 'sym', lambda_max=2), bf16."""
    row, col = edge_index[0], edge_index[1]
    A = jnp.zeros((num_nodes, num_nodes), jnp.float32).at[row, col].add(1.0)
    deg = A.sum(axis=1)
    dinv = jnp.where(deg > 0, 1.0 / jnp.sqrt(jnp.maximum(deg, 1e-12)), 0.0)
    return (-(dinv[:, None] * A * dinv[None, :])).astype(jnp.bfloat16)


if __name__ == "__main__":
    # Small shapes consistent with Kipfblock(n_input=4, n_hidden=32, K=8).
    N, n_input, n_hidden, K = 16, 4, 32, 8

    key = jax.random.PRNGKey(0)
    kx, kw, kb = jax.random.split(key, 3)

    # Node features.
    x = jax.random.normal(kx, (N, n_input), dtype=jnp.float32)

    # Undirected ring graph: edges (i, i+1 mod N) in both directions.
    src = jnp.arange(N, dtype=jnp.int32)
    dst = (src + 1) % N
    edge_index = jnp.stack(
        [jnp.concatenate([src, dst]), jnp.concatenate([dst, src])], axis=0
    )  # (2, 2N)

    # Deterministic parameter init (glorot-ish weights, zero bias), shapes as
    # in ChebConv(n_input, n_hidden, K=K).
    scale = jnp.sqrt(2.0 / (n_input + n_hidden)).astype(jnp.float32)
    weight = scale * jax.random.normal(kw, (K, n_input, n_hidden), dtype=jnp.float32)
    bias = jnp.zeros((n_hidden,), dtype=jnp.float32)

    lhat = scaled_laplacian(edge_index, N)          # bf16 (fed to the MXU)

    out = kipfblock_forward(lhat, x, weight, bias)
    out = jax.block_until_ready(out)

    # Plain-JAX f32 reference using the same (bf16-rounded) L_hat values; the
    # kernel additionally rounds the Tx operands to bf16, so loosen tolerance.
    lhat_f = lhat.astype(jnp.float32)
    tx0, tx1 = x, lhat_f @ x
    ref = tx0 @ weight[0] + tx1 @ weight[1]
    for k in range(2, K):
        tx2 = 2.0 * (lhat_f @ tx1) - tx0
        ref = ref + tx2 @ weight[k]
        tx0, tx1 = tx1, tx2
    ref = jnp.maximum(ref + bias[None, :], 0.0)

    assert out.shape == (N, n_hidden)
    assert jnp.allclose(out, ref, atol=5e-2, rtol=5e-2), (
        float(jnp.max(jnp.abs(out - ref))))

    print("KERNEL_OK")
</pallas_src>

<mosaic_0001>
module attributes {stable_mosaic.version = 11 : i64} {
  func.func @_kipf_cheb_kernel(%arg0: i32, %arg1: i32, %arg2: memref<16x16xbf16, #tpu.memory_space<vmem>>, %arg3: memref<16x4xf32, #tpu.memory_space<vmem>>, %arg4: memref<8x4x128xf32, #tpu.memory_space<vmem>>, %arg5: memref<1x128xf32, #tpu.memory_space<vmem>>, %arg6: memref<16x128xf32, #tpu.memory_space<vmem>>, %arg7: memref<8x16x4xf32, #tpu.memory_space<vmem>>) attributes {dimension_semantics = [#tpu.dimension_semantics<arbitrary>, #tpu.dimension_semantics<arbitrary>], iteration_bounds = array<i64: 7, 1>, scalar_prefetch = 0 : i64, scratch_operands = 1 : i64, tpu.core_type = #tpu.core_type<tc>, window_params = [{transform_indices = @transform_0, window_bounds = array<i64: 16, 16>}, {pipeline_mode = #tpu.pipeline_mode<synchronous>, transform_indices = @transform_1, window_bounds = array<i64: 16, 4>}, {pipeline_mode = #tpu.pipeline_mode<synchronous>, transform_indices = @transform_2, window_bounds = array<i64: 8, 4, 128>}, {pipeline_mode = #tpu.pipeline_mode<synchronous>, transform_indices = @transform_3, window_bounds = array<i64: 1, 128>}, {transform_indices = @transform_4, window_bounds = array<i64: 16, 128>}]} {
    %c16_i32 = arith.constant 16 : i32
    %0 = arith.muli %arg1, %c16_i32 : i32
    %1 = tpu.assume_multiple %0, 8 : i32
    %c0_i32 = arith.constant 0 : i32
    %2 = arith.cmpi eq, %arg0, %c0_i32 : i32
    %3 = arith.extui %2 : i1 to i32
    %c0_i32_0 = arith.constant 0 : i32
    %4 = arith.cmpi ne, %3, %c0_i32_0 : i32
    scf.if %4 {
      %34 = arith.index_cast %1 : i32 to index
      %c0_14 = arith.constant 0 : index
      %35 = vector.load %arg3[%34, %c0_14] : memref<16x4xf32, #tpu.memory_space<vmem>>, vector<16x4xf32>
      %c0_15 = arith.constant 0 : index
      %36 = arith.index_cast %1 : i32 to index
      %c0_16 = arith.constant 0 : index
      %37 = vector.load %arg7[%c0_15, %36, %c0_16] : memref<8x16x4xf32, #tpu.memory_space<vmem>>, vector<1x16x4xf32>
      %38 = vector.shape_cast %37 : vector<1x16x4xf32> to vector<16x4xf32>
      %39 = vector.shape_cast %35 : vector<16x4xf32> to vector<1x16x4xf32>
      tpu.vector_store %arg7[%c0_15, %36, %c0_16], %39 {strides = array<i32>} : memref<8x16x4xf32, #tpu.memory_space<vmem>>, vector<1x16x4xf32>,
    } else {
    }
    %c0_i32_1 = arith.constant 0 : i32
    %5 = arith.cmpi eq, %arg0, %c0_i32_1 : i32
    %c0 = arith.constant 0 : index
    %c0_2 = arith.constant 0 : index
    %6 = vector.load %arg3[%c0, %c0_2] : memref<16x4xf32, #tpu.memory_space<vmem>>, vector<16x4xf32>
    %7 = arith.index_cast %arg0 : i32 to index
    %c0_3 = arith.constant 0 : index
    %c0_4 = arith.constant 0 : index
    %8 = vector.load %arg7[%7, %c0_3, %c0_4] : memref<8x16x4xf32, #tpu.memory_space<vmem>>, vector<1x16x4xf32>
    %9 = vector.shape_cast %8 : vector<1x16x4xf32> to vector<16x4xf32>
    %10 = arith.select %5, %6, %9 : vector<16x4xf32>
    %c0_5 = arith.constant 0 : index
    %c0_6 = arith.constant 0 : index
    %11 = vector.load %arg2[%c0_5, %c0_6] : memref<16x16xbf16, #tpu.memory_space<vmem>>, vector<16x16xbf16>
    %12 = arith.truncf %10 : vector<16x4xf32> to vector<16x4xbf16>
    %cst = arith.constant dense<0.000000e+00> : vector<16x4xf32>
    %13 = tpu.matmul %11, %12, %cst {dimension_numbers = #tpu.dot_dimension_numbers<[1], [0], [0], [1], [0, 0, 1, 1], [], []>} : vector<16x16xbf16>, vector<16x4xbf16>, vector<16x4xf32> -> vector<16x4xf32>
    %c1_i32 = arith.constant 1 : i32
    %14 = arith.subi %arg0, %c1_i32 : i32
    %c0_i32_7 = arith.constant 0 : i32
    %15 = arith.maxsi %14, %c0_i32_7 : i32
    %16 = arith.index_cast %15 : i32 to index
    %17 = arith.index_cast %1 : i32 to index
    %c0_8 = arith.constant 0 : index
    %18 = vector.load %arg7[%16, %17, %c0_8] : memref<8x16x4xf32, #tpu.memory_space<vmem>>, vector<1x16x4xf32>
    %19 = vector.shape_cast %18 : vector<1x16x4xf32> to vector<16x4xf32>
    %c0_i32_9 = arith.constant 0 : i32
    %20 = arith.cmpi eq, %arg0, %c0_i32_9 : i32
    %cst_10 = arith.constant 2.000000e+00 : f32
    %21 = vector.broadcast %cst_10 : f32 to vector<16x4xf32>
    %22 = arith.mulf %21, %13 : vector<16x4xf32>
    %23 = arith.subf %22, %19 : vector<16x4xf32>
    %24 = arith.select %20, %13, %23 : vector<16x4xf32>
    %c1_i32_11 = arith.constant 1 : i32
    %25 = arith.addi %arg0, %c1_i32_11 : i32
    %26 = arith.index_cast %25 : i32 to index
    %27 = arith.index_cast %1 : i32 to index
    %c0_12 = arith.constant 0 : index
    %28 = vector.load %arg7[%26, %27, %c0_12] : memref<8x16x4xf32, #tpu.memory_space<vmem>>, vector<1x16x4xf32>
    %29 = vector.shape_cast %28 : vector<1x16x4xf32> to vector<16x4xf32>
    %30 = vector.shape_cast %24 : vector<16x4xf32> to vector<1x16x4xf32>
    tpu.vector_store %arg7[%26, %27, %c0_12], %30 {strides = array<i32>} : memref<8x16x4xf32, #tpu.memory_space<vmem>>, vector<1x16x4xf32>,
    %c6_i32 = arith.constant 6 : i32
    %31 = arith.cmpi eq, %arg0, %c6_i32 : i32
    %32 = arith.extui %31 : i1 to i32
    %c0_i32_13 = arith.constant 0 : i32
    %33 = arith.cmpi ne, %32, %c0_i32_13 : i32
    scf.if %33 {
      %c0_14 = arith.constant 0 : index
      %34 = arith.index_cast %1 : i32 to index
      %c0_15 = arith.constant 0 : index
      %35 = vector.load %arg7[%c0_14, %34, %c0_15] : memref<8x16x4xf32, #tpu.memory_space<vmem>>, vector<1x16x4xf32>
      %36 = vector.shape_cast %35 : vector<1x16x4xf32> to vector<16x4xf32>
      %c0_16 = arith.constant 0 : index
      %c0_17 = arith.constant 0 : index
      %c0_18 = arith.constant 0 : index
      %37 = vector.load %arg4[%c0_16, %c0_17, %c0_18] : memref<8x4x128xf32, #tpu.memory_space<vmem>>, vector<1x4x128xf32>
      %38 = vector.shape_cast %37 : vector<1x4x128xf32> to vector<4x128xf32>
      %cst_19 = arith.constant dense<0.000000e+00> : vector<16x128xf32>
      %39 = tpu.matmul %36, %38, %cst_19 {dimension_numbers = #tpu.dot_dimension_numbers<[1], [0], [0], [1], [0, 0, 1, 1], [], []>} : vector<16x4xf32>, vector<4x128xf32>, vector<16x128xf32> -> vector<16x128xf32>
      %c1 = arith.constant 1 : index
      %40 = arith.index_cast %1 : i32 to index
      %c0_20 = arith.constant 0 : index
      %41 = vector.load %arg7[%c1, %40, %c0_20] : memref<8x16x4xf32, #tpu.memory_space<vmem>>, vector<1x16x4xf32>
      %42 = vector.shape_cast %41 : vector<1x16x4xf32> to vector<16x4xf32>
      %c1_21 = arith.constant 1 : index
      %c0_22 = arith.constant 0 : index
      %c0_23 = arith.constant 0 : index
      %43 = vector.load %arg4[%c1_21, %c0_22, %c0_23] : memref<8x4x128xf32, #tpu.memory_space<vmem>>, vector<1x4x128xf32>
      %44 = vector.shape_cast %43 : vector<1x4x128xf32> to vector<4x128xf32>
      %cst_24 = arith.constant dense<0.000000e+00> : vector<16x128xf32>
      %45 = tpu.matmul %42, %44, %cst_24 {dimension_numbers = #tpu.dot_dimension_numbers<[1], [0], [0], [1], [0, 0, 1, 1], [], []>} : vector<16x4xf32>, vector<4x128xf32>, vector<16x128xf32> -> vector<16x128xf32>
      %46 = arith.addf %39, %45 : vector<16x128xf32>
      %c2 = arith.constant 2 : index
      %47 = arith.index_cast %1 : i32 to index
      %c0_25 = arith.constant 0 : index
      %48 = vector.load %arg7[%c2, %47, %c0_25] : memref<8x16x4xf32, #tpu.memory_space<vmem>>, vector<1x16x4xf32>
      %49 = vector.shape_cast %48 : vector<1x16x4xf32> to vector<16x4xf32>
      %c2_26 = arith.constant 2 : index
      %c0_27 = arith.constant 0 : index
      %c0_28 = arith.constant 0 : index
      %50 = vector.load %arg4[%c2_26, %c0_27, %c0_28] : memref<8x4x128xf32, #tpu.memory_space<vmem>>, vector<1x4x128xf32>
      %51 = vector.shape_cast %50 : vector<1x4x128xf32> to vector<4x128xf32>
      %cst_29 = arith.constant dense<0.000000e+00> : vector<16x128xf32>
      %52 = tpu.matmul %49, %51, %cst_29 {dimension_numbers = #tpu.dot_dimension_numbers<[1], [0], [0], [1], [0, 0, 1, 1], [], []>} : vector<16x4xf32>, vector<4x128xf32>, vector<16x128xf32> -> vector<16x128xf32>
      %53 = arith.addf %46, %52 : vector<16x128xf32>
      %c3 = arith.constant 3 : index
      %54 = arith.index_cast %1 : i32 to index
      %c0_30 = arith.constant 0 : index
      %55 = vector.load %arg7[%c3, %54, %c0_30] : memref<8x16x4xf32, #tpu.memory_space<vmem>>, vector<1x16x4xf32>
      %56 = vector.shape_cast %55 : vector<1x16x4xf32> to vector<16x4xf32>
      %c3_31 = arith.constant 3 : index
      %c0_32 = arith.constant 0 : index
      %c0_33 = arith.constant 0 : index
      %57 = vector.load %arg4[%c3_31, %c0_32, %c0_33] : memref<8x4x128xf32, #tpu.memory_space<vmem>>, vector<1x4x128xf32>
      %58 = vector.shape_cast %57 : vector<1x4x128xf32> to vector<4x128xf32>
      %cst_34 = arith.constant dense<0.000000e+00> : vector<16x128xf32>
      %59 = tpu.matmul %56, %58, %cst_34 {dimension_numbers = #tpu.dot_dimension_numbers<[1], [0], [0], [1], [0, 0, 1, 1], [], []>} : vector<16x4xf32>, vector<4x128xf32>, vector<16x128xf32> -> vector<16x128xf32>
      %60 = arith.addf %53, %59 : vector<16x128xf32>
      %c4 = arith.constant 4 : index
      %61 = arith.index_cast %1 : i32 to index
      %c0_35 = arith.constant 0 : index
      %62 = vector.load %arg7[%c4, %61, %c0_35] : memref<8x16x4xf32, #tpu.memory_space<vmem>>, vector<1x16x4xf32>
      %63 = vector.shape_cast %62 : vector<1x16x4xf32> to vector<16x4xf32>
      %c4_36 = arith.constant 4 : index
      %c0_37 = arith.constant 0 : index
      %c0_38 = arith.constant 0 : index
      %64 = vector.load %arg4[%c4_36, %c0_37, %c0_38] : memref<8x4x128xf32, #tpu.memory_space<vmem>>, vector<1x4x128xf32>
      %65 = vector.shape_cast %64 : vector<1x4x128xf32> to vector<4x128xf32>
      %cst_39 = arith.constant dense<0.000000e+00> : vector<16x128xf32>
      %66 = tpu.matmul %63, %65, %cst_39 {dimension_numbers = #tpu.dot_dimension_numbers<[1], [0], [0], [1], [0, 0, 1, 1], [], []>} : vector<16x4xf32>, vector<4x128xf32>, vector<16x128xf32> -> vector<16x128xf32>
      %67 = arith.addf %60, %66 : vector<16x128xf32>
      %c5 = arith.constant 5 : index
      %68 = arith.index_cast %1 : i32 to index
      %c0_40 = arith.constant 0 : index
      %69 = vector.load %arg7[%c5, %68, %c0_40] : memref<8x16x4xf32, #tpu.memory_space<vmem>>, vector<1x16x4xf32>
      %70 = vector.shape_cast %69 : vector<1x16x4xf32> to vector<16x4xf32>
      %c5_41 = arith.constant 5 : index
      %c0_42 = arith.constant 0 : index
      %c0_43 = arith.constant 0 : index
      %71 = vector.load %arg4[%c5_41, %c0_42, %c0_43] : memref<8x4x128xf32, #tpu.memory_space<vmem>>, vector<1x4x128xf32>
      %72 = vector.shape_cast %71 : vector<1x4x128xf32> to vector<4x128xf32>
      %cst_44 = arith.constant dense<0.000000e+00> : vector<16x128xf32>
      %73 = tpu.matmul %70, %72, %cst_44 {dimension_numbers = #tpu.dot_dimension_numbers<[1], [0], [0], [1], [0, 0, 1, 1], [], []>} : vector<16x4xf32>, vector<4x128xf32>, vector<16x128xf32> -> vector<16x128xf32>
      %74 = arith.addf %67, %73 : vector<16x128xf32>
      %c6 = arith.constant 6 : index
      %75 = arith.index_cast %1 : i32 to index
      %c0_45 = arith.constant 0 : index
      %76 = vector.load %arg7[%c6, %75, %c0_45] : memref<8x16x4xf32, #tpu.memory_space<vmem>>, vector<1x16x4xf32>
      %77 = vector.shape_cast %76 : vector<1x16x4xf32> to vector<16x4xf32>
      %c6_46 = arith.constant 6 : index
      %c0_47 = arith.constant 0 : index
      %c0_48 = arith.constant 0 : index
      %78 = vector.load %arg4[%c6_46, %c0_47, %c0_48] : memref<8x4x128xf32, #tpu.memory_space<vmem>>, vector<1x4x128xf32>
      %79 = vector.shape_cast %78 : vector<1x4x128xf32> to vector<4x128xf32>
      %cst_49 = arith.constant dense<0.000000e+00> : vector<16x128xf32>
      %80 = tpu.matmul %77, %79, %cst_49 {dimension_numbers = #tpu.dot_dimension_numbers<[1], [0], [0], [1], [0, 0, 1, 1], [], []>} : vector<16x4xf32>, vector<4x128xf32>, vector<16x128xf32> -> vector<16x128xf32>
      %81 = arith.addf %74, %80 : vector<16x128xf32>
      %c7 = arith.constant 7 : index
      %82 = arith.index_cast %1 : i32 to index
      %c0_50 = arith.constant 0 : index
      %83 = vector.load %arg7[%c7, %82, %c0_50] : memref<8x16x4xf32, #tpu.memory_space<vmem>>, vector<1x16x4xf32>
      %84 = vector.shape_cast %83 : vector<1x16x4xf32> to vector<16x4xf32>
      %c7_51 = arith.constant 7 : index
      %c0_52 = arith.constant 0 : index
      %c0_53 = arith.constant 0 : index
      %85 = vector.load %arg4[%c7_51, %c0_52, %c0_53] : memref<8x4x128xf32, #tpu.memory_space<vmem>>, vector<1x4x128xf32>
      %86 = vector.shape_cast %85 : vector<1x4x128xf32> to vector<4x128xf32>
      %cst_54 = arith.constant dense<0.000000e+00> : vector<16x128xf32>
      %87 = tpu.matmul %84, %86, %cst_54 {dimension_numbers = #tpu.dot_dimension_numbers<[1], [0], [0], [1], [0, 0, 1, 1], [], []>} : vector<16x4xf32>, vector<4x128xf32>, vector<16x128xf32> -> vector<16x128xf32>
      %88 = arith.addf %81, %87 : vector<16x128xf32>
      %c0_55 = arith.constant 0 : index
      %c0_56 = arith.constant 0 : index
      %89 = vector.load %arg5[%c0_55, %c0_56] : memref<1x128xf32, #tpu.memory_space<vmem>>, vector<1x128xf32>
      %90 = vector.broadcast %89 : vector<1x128xf32> to vector<16x128xf32>
      %91 = arith.addf %88, %90 : vector<16x128xf32>
      %cst_57 = arith.constant 0.000000e+00 : f32
      %92 = vector.broadcast %cst_57 : f32 to vector<16x128xf32>
      %93 = arith.maximumf %91, %92 : vector<16x128xf32>
      %c0_58 = arith.constant 0 : index
      %c0_59 = arith.constant 0 : index
      %94 = vector.load %arg6[%c0_58, %c0_59] : memref<16x128xf32, #tpu.memory_space<vmem>>, vector<16x128xf32>
      tpu.vector_store %arg6[%c0_58, %c0_59], %93 {strides = array<i32>} : memref<16x128xf32, #tpu.memory_space<vmem>>, vector<16x128xf32>,
    } else {
    }
    return
  }
  func.func @transform_0(%arg0: i32, %arg1: i32) -> (i32, i32) {
    %c0_i32 = arith.constant 0 : i32
    %c0_i32_0 = arith.constant 0 : i32
    return %arg1, %c0_i32 : i32, i32
  }
  func.func @transform_1(%arg0: i32, %arg1: i32) -> (i32, i32) {
    %c0_i32 = arith.constant 0 : i32
    %c0_i32_0 = arith.constant 0 : i32
    %c0_i32_1 = arith.constant 0 : i32
    return %c0_i32, %c0_i32_0 : i32, i32
  }
  func.func @transform_2(%arg0: i32, %arg1: i32) -> (i32, i32, i32) {
    %c0_i32 = arith.constant 0 : i32
    %c0_i32_0 = arith.constant 0 : i32
    %c0_i32_1 = arith.constant 0 : i32
    %c0_i32_2 = arith.constant 0 : i32
    return %c0_i32, %c0_i32_0, %c0_i32_1 : i32, i32, i32
  }
  func.func @transform_3(%arg0: i32, %arg1: i32) -> (i32, i32) {
    %c0_i32 = arith.constant 0 : i32
    %c0_i32_0 = arith.constant 0 : i32
    %c0_i32_1 = arith.constant 0 : i32
    return %c0_i32, %c0_i32_0 : i32, i32
  }
  func.func @transform_4(%arg0: i32, %arg1: i32) -> (i32, i32) {
    %c0_i32 = arith.constant 0 : i32
    %c0_i32_0 = arith.constant 0 : i32
    return %arg1, %c0_i32 : i32, i32
  }
}

</mosaic_0001>

<llo_original>
// kernel: tpu_custom_call.1
$region0: #{tpu_custom_call.1}
  #allocation0 [shape = 'u32[]', space=smem, size = 0x4, offset = 0x4, fixed_abs, tag = 'smem constant byte address 0x4 - core index']
  #allocation1 [shape = 'u32[144,128]{1,0:T(1,128)}', space=vmem, size = 0x12000, scoped, tag = 'internal scratch']
  #allocation2 [shape = 'f32[8,16,4]{2,1,0:T(8,128)}', space=vmem, size = 0x10000, scoped, tag = 'scratch operand']
  %s0 = inlined_call_operand.vmem [shape: bf16[16,16], index: 0, kind: input, shape index: {}]
  %s1 = inlined_call_operand.vmem [shape: f32[16,4], index: 1, kind: input, shape index: {}]
  %s2 = inlined_call_operand.hbm [shape: f32[8,4,128], index: 2, kind: input, shape index: {}]
  %s3 = inlined_call_operand.vmem [shape: f32[1,128], index: 3, kind: input, shape index: {}]
  %s4 = inlined_call_operand.hbm [shape: f32[16,128], index: 4, kind: output, shape index: {}]
  %s5 = sld [smem:[#allocation0]]
  $region61: #{tpu_custom_call.1} parent=0
    _
  %s7 = ssub.s32 1, %s5
  %s8 = scalar_select 0, %s7, %s5
  $region1: #{tpu_custom_call.1} parent=0
    #allocation3 [shape = 'u8[16384]{0}', space=vmem, size = 0x4000, scoped, tag = 'input window, operand 2, single buffered']
    #allocation4 [shape = 's32[2]{0}', space=sflag, size = 0x8, scoped, tag = 'scoped memory for tpu_custom_call.1']
    #allocation5 [shape = 's32[2]{0}', space=sflag, size = 0x8, scoped, tag = 'scoped memory for tpu_custom_call.1']
    #allocation6 [shape = 'u8[8192]{0}', space=vmem, size = 0x2000, scoped, tag = 'output window, operand 0, single buffered']
    %9 = vsyncpa [#allocation4], 0
    %10 = vsyncpa [#allocation5], 0
    loop: start=0, step=1, limit=9
    $region2: #{tpu_custom_call.1} parent=1 // loop_pre_header
      _
    $region3: #{tpu_custom_call.1} parent=1 // loop_header
      %s12 = sphi 0, %s16
      %p13 = scmp.ge.s32.totalorder %s12, 9
      %s19 = sphi 0, %s31
      %s20 = sphi 0, %s27
      %s21 = sphi 0, %s19
      %s22 = sphi 0, %s20
      %s23 = sphi 0, %s21
      %s24 = sphi 0, %s22
      %s34 = sphi 0, %s36
      %s37 = sphi 0, %s34
      %s38 = sphi 0, %s37
      %s54 = sphi 0, %s38
      %s58 = sphi 0, %s58
      %s60 = sphi 0, %s58
      %s61 = sphi 0, %s60
      %s75 = sphi 0, %s61
      %s79 = sphi 0, %s79
      %s81 = sphi 0, %s79
      %s82 = sphi 0, %s81
      %s96 = sphi 0, %s82
      %s100 = sphi 0, %s100
      %s102 = sphi 0, %s100
      %s103 = sphi 0, %s102
      %s117 = sphi 0, %s103
      %s123 = sphi 0, %s125
      %s126 = sphi 0, %s123
      %s127 = sphi 0, %s126
      %s143 = sphi 0, %s127
    $region4: #{tpu_custom_call.1} parent=1 // loop_header_branch
      %15 = sbr.rel (%p13) target = $region8
    $region5: #{tpu_custom_call.1} parent=1 // loop_body
      %s17 = ssub.s32 %s12, 1
      %s18 = ssub.s32 %s12, 2
      %s25 = sadd.s32 1, %s20
      %p26 = scmp.ge.s32.totalorder %s25, 1
      %s27 = scalar_select %p26, 0, %s25
      %s28 = sadd.s32 1, %s19
      %s29 = scalar_select %p26, %s28, %s19
      %p30 = scmp.ge.s32.totalorder %s29, 7
      %s31 = scalar_select %p30, 0, %s29
      %s32 = ssub.s32 %s20, %s27
      %p33 = scmp.eq.s32.totalorder %s32, 0
      %s35 = sadd.s32 %s34, 1
      %s36 = scalar_select %p33, %s34, %s35
      %p39 = pneg %p33
      %p40 = scmp.eq.s32.totalorder %s12, 6
      %p41 = por %p39, %p40
      %p42 = scmp.ne.s32.totalorder %s34, %s37
      %p43 = scmp.eq.s32.totalorder %s12, 0
      %p44 = por %p42, %p43
      %p45 = scmp.ne.s32.totalorder %s34, %s37
      %p46 = scmp.eq.s32.totalorder %s17, 6
      %p47 = por %p45, %p46
      %p48 = scmp.ne.s32.totalorder %s37, %s38
      %p49 = scmp.eq.s32.totalorder %s17, 0
      %p50 = por %p48, %p49
      %p51 = scmp.ne.s32.totalorder %s37, %s38
      %p52 = scmp.eq.s32.totalorder %s18, 6
      %p53 = por %p51, %p52
      %p55 = scmp.ne.s32.totalorder %s38, %s54
      %p56 = scmp.eq.s32.totalorder %s18, 0
      %p57 = por %p55, %p56
      %s59 = sadd.s32 %s58, 1
      %p62 = scmp.eq.s32.totalorder %s12, 6
      %p63 = scmp.ne.s32.totalorder %s58, %s60
      %p64 = scmp.eq.s32.totalorder %s12, 0
      %p65 = por %p63, %p64
      %p66 = scmp.ne.s32.totalorder %s58, %s60
      %p67 = scmp.eq.s32.totalorder %s17, 6
      %p68 = por %p66, %p67
      %p69 = scmp.ne.s32.totalorder %s60, %s61
      %p70 = scmp.eq.s32.totalorder %s17, 0
      %p71 = por %p69, %p70
      %p72 = scmp.ne.s32.totalorder %s60, %s61
      %p73 = scmp.eq.s32.totalorder %s18, 6
      %p74 = por %p72, %p73
      %p76 = scmp.ne.s32.totalorder %s61, %s75
      %p77 = scmp.eq.s32.totalorder %s18, 0
      %p78 = por %p76, %p77
      %s80 = sadd.s32 %s79, 1
      %p83 = scmp.eq.s32.totalorder %s12, 6
      %p84 = scmp.ne.s32.totalorder %s79, %s81
      %p85 = scmp.eq.s32.totalorder %s12, 0
      %p86 = por %p84, %p85
      %p87 = scmp.ne.s32.totalorder %s79, %s81
      %p88 = scmp.eq.s32.totalorder %s17, 6
      %p89 = por %p87, %p88
      %p90 = scmp.ne.s32.totalorder %s81, %s82
      %p91 = scmp.eq.s32.totalorder %s17, 0
      %p92 = por %p90, %p91
      %p93 = scmp.ne.s32.totalorder %s81, %s82
      %p94 = scmp.eq.s32.totalorder %s18, 6
      %p95 = por %p93, %p94
      %p97 = scmp.ne.s32.totalorder %s82, %s96
      %p98 = scmp.eq.s32.totalorder %s18, 0
      %p99 = por %p97, %p98
      %s101 = sadd.s32 %s100, 1
      %p104 = scmp.eq.s32.totalorder %s12, 6
      %p105 = scmp.ne.s32.totalorder %s100, %s102
      %p106 = scmp.eq.s32.totalorder %s12, 0
      %p107 = por %p105, %p106
      %p108 = scmp.ne.s32.totalorder %s100, %s102
      %p109 = scmp.eq.s32.totalorder %s17, 6
      %p110 = por %p108, %p109
      %p111 = scmp.ne.s32.totalorder %s102, %s103
      %p112 = scmp.eq.s32.totalorder %s17, 0
      %p113 = por %p111, %p112
      %p114 = scmp.ne.s32.totalorder %s102, %s103
      %p115 = scmp.eq.s32.totalorder %s18, 6
      %p116 = por %p114, %p115
      %p118 = scmp.ne.s32.totalorder %s103, %s117
      %p119 = scmp.eq.s32.totalorder %s18, 0
      %p120 = por %p118, %p119
      %s121 = ssub.s32 %s20, %s27
      %p122 = scmp.eq.s32.totalorder %s121, 0
      %s124 = sadd.s32 %s123, 1
      %s125 = scalar_select %p122, %s123, %s124
      %p128 = pneg %p122
      %p129 = scmp.eq.s32.totalorder %s12, 6
      %p130 = por %p128, %p129
      %p131 = scmp.ne.s32.totalorder %s123, %s126
      %p132 = scmp.eq.s32.totalorder %s12, 0
      %p133 = por %p131, %p132
      %p134 = scmp.ne.s32.totalorder %s123, %s126
      %p135 = scmp.eq.s32.totalorder %s17, 6
      %p136 = por %p134, %p135
      %p137 = scmp.ne.s32.totalorder %s126, %s127
      %p138 = scmp.eq.s32.totalorder %s17, 0
      %p139 = por %p137, %p138
      %p140 = scmp.ne.s32.totalorder %s126, %s127
      %p141 = scmp.eq.s32.totalorder %s18, 6
      %p142 = por %p140, %p141
      %p144 = scmp.ne.s32.totalorder %s127, %s143
      %p145 = scmp.eq.s32.totalorder %s18, 0
      %p146 = por %p144, %p145
      %p147 = scmp.le.s32.totalorder 1, %s12
      %p148 = scmp.lt.s32.totalorder %s12, 8
      %p149 = pnand %p147, %p148
      %p150 = pneg %p149
      // Predicated region
      $region9: #{tpu_custom_call.1} parent=5 // pred_check
        _
      $region10: #{tpu_custom_call.1} parent=5 // pred_check_branch
        %152 = sbr.rel (%p149) target = $region12
      $region11: #{tpu_custom_call.1} parent=5 // pred_region
        %s153 = ssub.s32 %s12, 1
        // Predicated region
        $region13: #{tpu_custom_call.1} parent=11 // pred_check
          %p154 = pneg %p50
        $region14: #{tpu_custom_call.1} parent=11 // pred_check_branch
          %156 = sbr.rel (%p154) target = $region16
        $region15: #{tpu_custom_call.1} parent=11 // pred_region
          %s157 = smul.u32 2, %s22
          %p158 = scmp.lt.s32.totalorder %s157, 1
          %s159 = scalar_select %p158, %s157, 1
          %s160 = smul.addr %s159, 4
          %s161 = scalar_lea.vmem %s0, %s160
          %s162 = smul.u32 2, %s22
        $region16: #{tpu_custom_call.1} parent=11 // pred_fallthru
          _
        // Predicated region
        $region17: #{tpu_custom_call.1} parent=11 // pred_check
          %p163 = pneg %p71
        $region18: #{tpu_custom_call.1} parent=11 // pred_check_branch
          %165 = sbr.rel (%p163) target = $region20
        $region19: #{tpu_custom_call.1} parent=11 // pred_region
          _
        $region20: #{tpu_custom_call.1} parent=11 // pred_fallthru
          _
        // Predicated region
        $region21: #{tpu_custom_call.1} parent=11 // pred_check
          %p166 = pneg %p92
        $region22: #{tpu_custom_call.1} parent=11 // pred_check_branch
          %168 = sbr.rel (%p166) target = $region24
        $region23: #{tpu_custom_call.1} parent=11 // pred_region
          %s170 = ssub.s32 512, 512
          %171 = vsyncadd [#allocation4], %s170
          %s172 = sshll.u32 [#allocation3], 4
          %s173 = int_to_ptr.vmem [resolvable:$true] %s172
          %178 = dma.hbm_to_vmem [thread:$0]  %s2, 512, %s173, [#allocation4], 64, 64, 4
        $region24: #{tpu_custom_call.1} parent=11 // pred_fallthru
          _
        // Predicated region
        $region25: #{tpu_custom_call.1} parent=11 // pred_check
          %p179 = pneg %p113
        $region26: #{tpu_custom_call.1} parent=11 // pred_check_branch
          %181 = sbr.rel (%p179) target = $region28
        $region27: #{tpu_custom_call.1} parent=11 // pred_region
          _
        $region28: #{tpu_custom_call.1} parent=11 // pred_fallthru
          _
      $region12: #{tpu_custom_call.1} parent=5 // pred_fallthru
        _
      %p182 = scmp.lt.s32.totalorder %s12, 7
      // Predicated region
      $region29: #{tpu_custom_call.1} parent=5 // pred_check
        %p183 = pneg %p182
      $region30: #{tpu_custom_call.1} parent=5 // pred_check_branch
        %185 = sbr.rel (%p183) target = $region32
      $region31: #{tpu_custom_call.1} parent=5 // pred_region
        _
      $region32: #{tpu_custom_call.1} parent=5 // pred_fallthru
        _
      %p186 = scmp.le.s32.totalorder 1, %s12
      %p187 = scmp.lt.s32.totalorder %s12, 8
      %p188 = pnand %p186, %p187
      %p189 = pneg %p188
      // Predicated region
      $region33: #{tpu_custom_call.1} parent=5 // pred_check
        _
      $region34: #{tpu_custom_call.1} parent=5 // pred_check_branch
        %191 = sbr.rel (%p188) target = $region36
      $region35: #{tpu_custom_call.1} parent=5 // pred_region
        %s192 = ssub.s32 %s12, 1
        // Predicated region
        $region37: #{tpu_custom_call.1} parent=35 // pred_check
          %p193 = pneg %p92
        $region38: #{tpu_custom_call.1} parent=35 // pred_check_branch
          %195 = sbr.rel (%p193) target = $region40
        $region39: #{tpu_custom_call.1} parent=35 // pred_region
          %196 = dma.done [#allocation4], 512
        $region40: #{tpu_custom_call.1} parent=35 // pred_fallthru
          _
        %s197 = smul.u32 2, %s22
        %p198 = scmp.lt.s32.totalorder %s197, 1
        %s199 = scalar_select %p198, %s197, 1
        %s200 = smul.addr %s199, 4
        %s201 = scalar_lea.vmem %s0, %s200
        %p202 = pneg %p50
        %p203 = pneg %p47
        %p204 = pneg %p71
        %p205 = pneg %p68
        %p206 = pneg %p92
        %p207 = pneg %p89
        %p208 = pneg %p113
        %p209 = pneg %p110
        %p210 = pneg %p139
        %p211 = pneg %p136
        %s212 = smul.u32 2, %s22
        %p213 = scmp.lt.s32.totalorder %s212, 1
        %s214 = scalar_select %p213, %s212, 1
        %s215 = smul.addr %s214, 4
        %s216 = scalar_lea.vmem %s0, %s215
        %s217 = smul.u32 2, %s22
        %s218 = smul.u32 2, %s22
        %s220 = smul.u32 %s22, 16
        %p221 = scmp.eq.s32.totalorder %s21, 0
        // Predicated region
        $region41: #{tpu_custom_call.1} parent=35 // pred_check
          %p222 = pneg %p221
        $region42: #{tpu_custom_call.1} parent=35 // pred_check_branch
          %224 = sbr.rel (%p222) target = $region44
        $region43: #{tpu_custom_call.1} parent=35 // pred_region
          %s225 = scalar_lea.vmem %s1, %s220
          %v226 = vld [vmem:[%s225] sm:$0xff]
          %v227 = vld [vmem:[%s225 + $0x8] sm:$0xff]
          %s228 = scalar_lea.vmem [#allocation2], %s220
          %vm229 = vcmask 31744
          %230 = vst.msk [vmem:[%s228] sm:$0xff] %vm229, %v226
          %231 = vst.msk [vmem:[%s228 + $0x8] sm:$0xff] %vm229, %v227
        $region44: #{tpu_custom_call.1} parent=35 // pred_fallthru
          _
        %v232 = vld [vmem:[%s1] sm:$0xff]
        %v233 = vld [vmem:[%s1 + $0x8] sm:$0xff]
        %s234 = smul.u32 %s21, 16
        %s235 = scalar_lea.vmem [#allocation2], %s234
        %v236 = vld [vmem:[%s235] sm:$0xff]
        %v237 = vld [vmem:[%s235 + $0x8] sm:$0xff]
        %s238 = scalar_select %p221, 1, 0
        %v239 = vstv %s238
        %vm240 = vcmp.eq.s32.totalorder %v239, 1
        %v241 = vsel %vm240, %v232, %v236
        %v242 = vsel %vm240, %v233, %v237
        %v243 = vld [vmem:[%s216] sm:$0xf]
        %v244 = vld [vmem:[%s216 + $0x4] sm:$0xf]
        %v245 = vpack.c.bf16 %v242, %v241
        %v248 = vunpack.c.l.b16 %v243
        %v249 = vunpack.c.l.b16 %v244
        %v250 = vpack.c.b16 %v249, %v248
        %vm251 = vcmask 130048
        %v253 = vsel %vm251, %v250, 0
        %255 = vmatprep.subr.bf16.mxu0 0
        %256 = vmatpush1.bf16.msra.mxu0 %v245
        %257 = vmatprep.subr.bf16.mxu0 0
        %258 = vmatpush1.bf16.msra.mxu0 0
        %259 = vmatprep.subr.bf16.mxu0 0
        %260 = vmatpush1.bf16.msra.mxu0 0
        %261 = vmatprep.subr.bf16.mxu0 0
        %262 = vmatpush1.bf16.msra.mxu0 0
        %263 = vmatprep.subr.bf16.mxu0 0
        %264 = vmatpush1.bf16.msra.mxu0 0
        %265 = vmatprep.subr.bf16.mxu0 0
        %266 = vmatpush1.bf16.msra.mxu0 0
        %267 = vmatprep.subr.bf16.mxu0 0
        %268 = vmatpush1.bf16.msra.mxu0 0
        %269 = vmatprep.subr.bf16.mxu0 0
        %270 = vmatpush1.bf16.msra.mxu0 0
        %271 = vmatprep.subr.bf16.mxu0 0
        %272 = vmatpush1.bf16.msra.mxu0 0
        %273 = vmatprep.subr.bf16.mxu0 0
        %274 = vmatpush1.bf16.msra.mxu0 0
        %275 = vmatprep.subr.bf16.mxu0 0
        %276 = vmatpush1.bf16.msra.mxu0 0
        %277 = vmatprep.subr.bf16.mxu0 0
        %278 = vmatpush1.bf16.msra.mxu0 0
        %279 = vmatprep.subr.bf16.mxu0 0
        %280 = vmatpush1.bf16.msra.mxu0 0
        %281 = vmatprep.subr.bf16.mxu0 0
        %282 = vmatpush1.bf16.msra.mxu0 0
        %283 = vmatprep.subr.bf16.mxu0 0
        %284 = vmatpush1.bf16.msra.mxu0 0
        %285 = vmatprep.subr.bf16.mxu0 0
        %286 = vmatpush1.bf16.msra.mxu0 0
        %287 = vmatprep.mubr.bf16.mxu0 0
        %288 = vmatmul.mubr.bf16.gmra.mrb[0].mxu0 %v253
        %v289 = vpop.f32.mrb[0].mxu0
        %v290 = vadd.f32 0.0, %v289
        %v291 = vpop.f32.mrb[0].mxu0
        %v292 = vpop.f32.mrb[0].mxu0
        %v293 = vadd.f32 0.0, %v292
        %v294 = vpop.f32.mrb[0].mxu0
        %295 = vdwg.mxu0
        %s296 = ssub.s32 %s21, 1
        %p297 = scmp.gt.s32.totalorder %s296, 0
        %s298 = scalar_select %p297, %s296, 0
        %s299 = smul.u32 %s298, 16
        %s300 = sadd.s32 %s220, %s299
        %s301 = scalar_lea.vmem [#allocation2], %s300
        %v302 = vld [vmem:[%s301] sm:$0xff]
        %v303 = vld [vmem:[%s301 + $0x8] sm:$0xff]
        %v304 = vmul.f32 %v290, 2.0
        %v305 = vmul.f32 %v293, 2.0
        %v306 = vsub.f32 %v304, %v302
        %v307 = vsub.f32 %v305, %v303
        %v308 = vsel %vm240, %v290, %v306
        %v309 = vsel %vm240, %v293, %v307
        %s310 = sadd.s32 %s21, 1
        %s311 = smul.u32 %s310, 16
        %s312 = sadd.s32 %s220, %s311
        %s313 = scalar_lea.vmem [#allocation2], %s312
        %vm314 = vcmask 31744
        %315 = vst.msk [vmem:[%s313] sm:$0xff] %vm314, %v308
        %316 = vst.msk [vmem:[%s313 + $0x8] sm:$0xff] %vm314, %v309
        %p317 = scmp.eq.s32.totalorder %s21, 6
        // Predicated region
        $region45: #{tpu_custom_call.1} parent=35 // pred_check
          %p318 = pneg %p317
        $region46: #{tpu_custom_call.1} parent=35 // pred_check_branch
          %320 = sbr.rel (%p318) target = $region48
        $region47: #{tpu_custom_call.1} parent=35 // pred_region
          %s321 = scalar_lea.vmem [#allocation2], %s220
          %v322 = vld [vmem:[%s321] sm:$0xff]
          %v323 = vld [vmem:[%s321 + $0x8] sm:$0xff]
          %v324 = vld [vmem:[#allocation3] sm:$0xf]
          %s325 = sadd.s32 %s220, 16
          %s326 = scalar_lea.vmem [#allocation2], %s325
          %v327 = vld [vmem:[%s326] sm:$0xff]
          %v328 = vld [vmem:[%s326 + $0x8] sm:$0xff]
          %s329 = scalar_lea.vmem [#allocation3], 4
          %v330 = vld [vmem:[%s329] sm:$0xf]
          %v332 = vsel %vm314, %v327, 0
          %v335 = vsel %vm314, %v328, 0
          %vm337 = vcmask 1043456
          %v339 = vsel %vm337, %v330, 0
          %341 = vmatprep.subr.mxu0 0.0
          %342 = vmatpush1.msra.mxu0 %v339
          %343 = vmatprep.subr.mxu0 0.0
          %344 = vmatpush1.msra.mxu0 0.0
          %345 = vmatprep.subr.mxu0 0.0
          %346 = vmatpush1.msra.mxu0 0.0
          %347 = vmatprep.subr.mxu0 0.0
          %348 = vmatpush1.msra.mxu0 0.0
          %349 = vmatprep.subr.mxu0 0.0
          %350 = vmatpush1.msra.mxu0 0.0
          %351 = vmatprep.subr.mxu0 0.0
          %352 = vmatpush1.msra.mxu0 0.0
          %353 = vmatprep.subr.mxu0 0.0
          %354 = vmatpush1.msra.mxu0 0.0
          %355 = vmatprep.subr.mxu0 0.0
          %356 = vmatpush1.msra.mxu0 0.0
          %357 = vmatprep.subr.mxu0 0.0
          %358 = vmatpush1.msra.mxu0 0.0
          %359 = vmatprep.subr.mxu0 0.0
          %360 = vmatpush1.msra.mxu0 0.0
          %361 = vmatprep.subr.mxu0 0.0
          %362 = vmatpush1.msra.mxu0 0.0
          %363 = vmatprep.subr.mxu0 0.0
          %364 = vmatpush1.msra.mxu0 0.0
          %365 = vmatprep.subr.mxu0 0.0
          %366 = vmatpush1.msra.mxu0 0.0
          %367 = vmatprep.subr.mxu0 0.0
          %368 = vmatpush1.msra.mxu0 0.0
          %369 = vmatprep.subr.mxu0 0.0
          %370 = vmatpush1.msra.mxu0 0.0
          %371 = vmatprep.subr.mxu0 0.0
          %372 = vmatpush1.msra.mxu0 0.0
          %373 = vmatprep.subr.mxu0 0.0
          %374 = vmatpush1.msra.mxu0 0.0
          %375 = vmatprep.subr.mxu0 0.0
          %376 = vmatpush1.msra.mxu0 0.0
          %377 = vmatprep.subr.mxu0 0.0
          %378 = vmatpush1.msra.mxu0 0.0
          %379 = vmatprep.subr.mxu0 0.0
          %380 = vmatpush1.msra.mxu0 0.0
          %381 = vmatprep.subr.mxu0 0.0
          %382 = vmatpush1.msra.mxu0 0.0
          %383 = vmatprep.subr.mxu0 0.0
          %384 = vmatpush1.msra.mxu0 0.0
          %385 = vmatprep.subr.mxu0 0.0
          %386 = vmatpush1.msra.mxu0 0.0
          %387 = vmatprep.subr.mxu0 0.0
          %388 = vmatpush1.msra.mxu0 0.0
          %389 = vmatprep.subr.mxu0 0.0
          %390 = vmatpush1.msra.mxu0 0.0
          %391 = vmatprep.subr.mxu0 0.0
          %392 = vmatpush1.msra.mxu0 0.0
          %393 = vmatprep.subr.mxu0 0.0
          %394 = vmatpush1.msra.mxu0 0.0
          %395 = vmatprep.subr.mxu0 0.0
          %396 = vmatpush1.msra.mxu0 0.0
          %397 = vmatprep.subr.mxu0 0.0
          %398 = vmatpush1.msra.mxu0 0.0
          %399 = vmatprep.subr.mxu0 0.0
          %400 = vmatpush1.msra.mxu0 0.0
          %401 = vmatprep.subr.mxu0 0.0
          %402 = vmatpush1.msra.mxu0 0.0
          %403 = vmatprep.subr.mxu0 0.0
          %404 = vmatpush1.msra.mxu0 0.0
          %405 = vmatprep.mubr.f32.mxu0 0.0
          %406 = vmatmul.mubr.f32.gmra.mrb[0].mxu0 %v332
          %v407 = vpop.f32.mrb[0].mxu0
          %v408 = vadd.f32 0.0, %v407
          %v409 = vpop.f32.mrb[0].mxu0
          %410 = vmatprep.mubr.f32.mxu0 0.0
          %411 = vmatmul.mubr.f32.gmra.mrb[0].mxu0 %v335
          %v412 = vpop.f32.mrb[0].mxu0
          %v413 = vadd.f32 0.0, %v412
          %v414 = vpop.f32.mrb[0].mxu0
          %415 = vdwg.mxu0
          %v417 = vsel %vm314, %v322, 0
          %v420 = vsel %vm314, %v323, 0
          %v423 = vsel %vm337, %v324, 0
          %425 = vmatprep.subr.mxu0 0.0
          %426 = vmatpush1.msra.mxu0 %v423
          %427 = vmatprep.subr.mxu0 0.0
          %428 = vmatpush1.msra.mxu0 0.0
          %429 = vmatprep.subr.mxu0 0.0
          %430 = vmatpush1.msra.mxu0 0.0
          %431 = vmatprep.subr.mxu0 0.0
          %432 = vmatpush1.msra.mxu0 0.0
          %433 = vmatprep.subr.mxu0 0.0
          %434 = vmatpush1.msra.mxu0 0.0
          %435 = vmatprep.subr.mxu0 0.0
          %436 = vmatpush1.msra.mxu0 0.0
          %437 = vmatprep.subr.mxu0 0.0
          %438 = vmatpush1.msra.mxu0 0.0
          %439 = vmatprep.subr.mxu0 0.0
          %440 = vmatpush1.msra.mxu0 0.0
          %441 = vmatprep.subr.mxu0 0.0
          %442 = vmatpush1.msra.mxu0 0.0
          %443 = vmatprep.subr.mxu0 0.0
          %444 = vmatpush1.msra.mxu0 0.0
          %445 = vmatprep.subr.mxu0 0.0
          %446 = vmatpush1.msra.mxu0 0.0
          %447 = vmatprep.subr.mxu0 0.0
          %448 = vmatpush1.msra.mxu0 0.0
          %449 = vmatprep.subr.mxu0 0.0
          %450 = vmatpush1.msra.mxu0 0.0
          %451 = vmatprep.subr.mxu0 0.0
          %452 = vmatpush1.msra.mxu0 0.0
          %453 = vmatprep.subr.mxu0 0.0
          %454 = vmatpush1.msra.mxu0 0.0
          %455 = vmatprep.subr.mxu0 0.0
          %456 = vmatpush1.msra.mxu0 0.0
          %457 = vmatprep.subr.mxu0 0.0
          %458 = vmatpush1.msra.mxu0 0.0
          %459 = vmatprep.subr.mxu0 0.0
          %460 = vmatpush1.msra.mxu0 0.0
          %461 = vmatprep.subr.mxu0 0.0
          %462 = vmatpush1.msra.mxu0 0.0
          %463 = vmatprep.subr.mxu0 0.0
          %464 = vmatpush1.msra.mxu0 0.0
          %465 = vmatprep.subr.mxu0 0.0
          %466 = vmatpush1.msra.mxu0 0.0
          %467 = vmatprep.subr.mxu0 0.0
          %468 = vmatpush1.msra.mxu0 0.0
          %469 = vmatprep.subr.mxu0 0.0
          %470 = vmatpush1.msra.mxu0 0.0
          %471 = vmatprep.subr.mxu0 0.0
          %472 = vmatpush1.msra.mxu0 0.0
          %473 = vmatprep.subr.mxu0 0.0
          %474 = vmatpush1.msra.mxu0 0.0
          %475 = vmatprep.subr.mxu0 0.0
          %476 = vmatpush1.msra.mxu0 0.0
          %477 = vmatprep.subr.mxu0 0.0
          %478 = vmatpush1.msra.mxu0 0.0
          %479 = vmatprep.subr.mxu0 0.0
          %480 = vmatpush1.msra.mxu0 0.0
          %481 = vmatprep.subr.mxu0 0.0
          %482 = vmatpush1.msra.mxu0 0.0
          %483 = vmatprep.subr.mxu0 0.0
          %484 = vmatpush1.msra.mxu0 0.0
          %485 = vmatprep.subr.mxu0 0.0
          %486 = vmatpush1.msra.mxu0 0.0
          %487 = vmatprep.subr.mxu0 0.0
          %488 = vmatpush1.msra.mxu0 0.0
          %489 = vmatprep.mubr.f32.mxu0 0.0
          %490 = vmatmul.mubr.f32.gmra.mrb[0].mxu0 %v417
          %v491 = vpop.f32.mrb[0].mxu0
          %v492 = vadd.f32 %v408, %v491
          %v493 = vpop.f32.mrb[0].mxu0
          %494 = vmatprep.mubr.f32.mxu0 0.0
          %495 = vmatmul.mubr.f32.gmra.mrb[0].mxu0 %v420
          %v496 = vpop.f32.mrb[0].mxu0
          %v497 = vadd.f32 %v413, %v496
          %v498 = vpop.f32.mrb[0].mxu0
          %499 = vdwg.mxu0
          %s500 = sadd.s32 %s220, 32
          %s501 = scalar_lea.vmem [#allocation2], %s500
          %v502 = vld [vmem:[%s501] sm:$0xff]
          %v503 = vld [vmem:[%s501 + $0x8] sm:$0xff]
          %s504 = scalar_lea.vmem [#allocation3], 8
          %v505 = vld [vmem:[%s504] sm:$0xf]
          %v507 = vsel %vm314, %v502, 0
          %v510 = vsel %vm314, %v503, 0
          %v513 = vsel %vm337, %v505, 0
          %515 = vmatprep.subr.mxu0 0.0
          %516 = vmatpush1.msra.mxu0 %v513
          %517 = vmatprep.subr.mxu0 0.0
          %518 = vmatpush1.msra.mxu0 0.0
          %519 = vmatprep.subr.mxu0 0.0
          %520 = vmatpush1.msra.mxu0 0.0
          %521 = vmatprep.subr.mxu0 0.0
          %522 = vmatpush1.msra.mxu0 0.0
          %523 = vmatprep.subr.mxu0 0.0
          %524 = vmatpush1.msra.mxu0 0.0
          %525 = vmatprep.subr.mxu0 0.0
          %526 = vmatpush1.msra.mxu0 0.0
          %527 = vmatprep.subr.mxu0 0.0
          %528 = vmatpush1.msra.mxu0 0.0
          %529 = vmatprep.subr.mxu0 0.0
          %530 = vmatpush1.msra.mxu0 0.0
          %531 = vmatprep.subr.mxu0 0.0
          %532 = vmatpush1.msra.mxu0 0.0
          %533 = vmatprep.subr.mxu0 0.0
          %534 = vmatpush1.msra.mxu0 0.0
          %535 = vmatprep.subr.mxu0 0.0
          %536 = vmatpush1.msra.mxu0 0.0
          %537 = vmatprep.subr.mxu0 0.0
          %538 = vmatpush1.msra.mxu0 0.0
          %539 = vmatprep.subr.mxu0 0.0
          %540 = vmatpush1.msra.mxu0 0.0
          %541 = vmatprep.subr.mxu0 0.0
          %542 = vmatpush1.msra.mxu0 0.0
          %543 = vmatprep.subr.mxu0 0.0
          %544 = vmatpush1.msra.mxu0 0.0
          %545 = vmatprep.subr.mxu0 0.0
          %546 = vmatpush1.msra.mxu0 0.0
          %547 = vmatprep.subr.mxu0 0.0
          %548 = vmatpush1.msra.mxu0 0.0
          %549 = vmatprep.subr.mxu0 0.0
          %550 = vmatpush1.msra.mxu0 0.0
          %551 = vmatprep.subr.mxu0 0.0
          %552 = vmatpush1.msra.mxu0 0.0
          %553 = vmatprep.subr.mxu0 0.0
          %554 = vmatpush1.msra.mxu0 0.0
          %555 = vmatprep.subr.mxu0 0.0
          %556 = vmatpush1.msra.mxu0 0.0
          %557 = vmatprep.subr.mxu0 0.0
          %558 = vmatpush1.msra.mxu0 0.0
          %559 = vmatprep.subr.mxu0 0.0
          %560 = vmatpush1.msra.mxu0 0.0
          %561 = vmatprep.subr.mxu0 0.0
          %562 = vmatpush1.msra.mxu0 0.0
          %563 = vmatprep.subr.mxu0 0.0
          %564 = vmatpush1.msra.mxu0 0.0
          %565 = vmatprep.subr.mxu0 0.0
          %566 = vmatpush1.msra.mxu0 0.0
          %567 = vmatprep.subr.mxu0 0.0
          %568 = vmatpush1.msra.mxu0 0.0
          %569 = vmatprep.subr.mxu0 0.0
          %570 = vmatpush1.msra.mxu0 0.0
          %571 = vmatprep.subr.mxu0 0.0
          %572 = vmatpush1.msra.mxu0 0.0
          %573 = vmatprep.subr.mxu0 0.0
          %574 = vmatpush1.msra.mxu0 0.0
          %575 = vmatprep.subr.mxu0 0.0
          %576 = vmatpush1.msra.mxu0 0.0
          %577 = vmatprep.subr.mxu0 0.0
          %578 = vmatpush1.msra.mxu0 0.0
          %579 = vmatprep.mubr.f32.mxu0 0.0
          %580 = vmatmul.mubr.f32.gmra.mrb[0].mxu0 %v507
          %v581 = vpop.f32.mrb[0].mxu0
          %v582 = vadd.f32 0.0, %v581
          %v583 = vpop.f32.mrb[0].mxu0
          %584 = vmatprep.mubr.f32.mxu0 0.0
          %585 = vmatmul.mubr.f32.gmra.mrb[0].mxu0 %v510
          %v586 = vpop.f32.mrb[0].mxu0
          %v587 = vadd.f32 0.0, %v586
          %v588 = vpop.f32.mrb[0].mxu0
          %589 = vdwg.mxu0
          %v590 = vadd.f32 %v492, %v582
          %v591 = vadd.f32 %v497, %v587
          %s592 = sadd.s32 %s220, 48
          %s593 = scalar_lea.vmem [#allocation2], %s592
          %v594 = vld [vmem:[%s593] sm:$0xff]
          %v595 = vld [vmem:[%s593 + $0x8] sm:$0xff]
          %s596 = scalar_lea.vmem [#allocation3], 12
          %v597 = vld [vmem:[%s596] sm:$0xf]
          %v599 = vsel %vm314, %v594, 0
          %v602 = vsel %vm314, %v595, 0
          %v605 = vsel %vm337, %v597, 0
          %607 = vmatprep.subr.mxu0 0.0
          %608 = vmatpush1.msra.mxu0 %v605
          %609 = vmatprep.subr.mxu0 0.0
          %610 = vmatpush1.msra.mxu0 0.0
          %611 = vmatprep.subr.mxu0 0.0
          %612 = vmatpush1.msra.mxu0 0.0
          %613 = vmatprep.subr.mxu0 0.0
          %614 = vmatpush1.msra.mxu0 0.0
          %615 = vmatprep.subr.mxu0 0.0
          %616 = vmatpush1.msra.mxu0 0.0
          %617 = vmatprep.subr.mxu0 0.0
          %618 = vmatpush1.msra.mxu0 0.0
          %619 = vmatprep.subr.mxu0 0.0
          %620 = vmatpush1.msra.mxu0 0.0
          %621 = vmatprep.subr.mxu0 0.0
          %622 = vmatpush1.msra.mxu0 0.0
          %623 = vmatprep.subr.mxu0 0.0
          %624 = vmatpush1.msra.mxu0 0.0
          %625 = vmatprep.subr.mxu0 0.0
          %626 = vmatpush1.msra.mxu0 0.0
          %627 = vmatprep.subr.mxu0 0.0
          %628 = vmatpush1.msra.mxu0 0.0
          %629 = vmatprep.subr.mxu0 0.0
          %630 = vmatpush1.msra.mxu0 0.0
          %631 = vmatprep.subr.mxu0 0.0
          %632 = vmatpush1.msra.mxu0 0.0
          %633 = vmatprep.subr.mxu0 0.0
          %634 = vmatpush1.msra.mxu0 0.0
          %635 = vmatprep.subr.mxu0 0.0
          %636 = vmatpush1.msra.mxu0 0.0
          %637 = vmatprep.subr.mxu0 0.0
          %638 = vmatpush1.msra.mxu0 0.0
          %639 = vmatprep.subr.mxu0 0.0
          %640 = vmatpush1.msra.mxu0 0.0
          %641 = vmatprep.subr.mxu0 0.0
          %642 = vmatpush1.msra.mxu0 0.0
          %643 = vmatprep.subr.mxu0 0.0
          %644 = vmatpush1.msra.mxu0 0.0
          %645 = vmatprep.subr.mxu0 0.0
          %646 = vmatpush1.msra.mxu0 0.0
          %647 = vmatprep.subr.mxu0 0.0
          %648 = vmatpush1.msra.mxu0 0.0
          %649 = vmatprep.subr.mxu0 0.0
          %650 = vmatpush1.msra.mxu0 0.0
          %651 = vmatprep.subr.mxu0 0.0
          %652 = vmatpush1.msra.mxu0 0.0
          %653 = vmatprep.subr.mxu0 0.0
          %654 = vmatpush1.msra.mxu0 0.0
          %655 = vmatprep.subr.mxu0 0.0
          %656 = vmatpush1.msra.mxu0 0.0
          %657 = vmatprep.subr.mxu0 0.0
          %658 = vmatpush1.msra.mxu0 0.0
          %659 = vmatprep.subr.mxu0 0.0
          %660 = vmatpush1.msra.mxu0 0.0
          %661 = vmatprep.subr.mxu0 0.0
          %662 = vmatpush1.msra.mxu0 0.0
          %663 = vmatprep.subr.mxu0 0.0
          %664 = vmatpush1.msra.mxu0 0.0
          %665 = vmatprep.subr.mxu0 0.0
          %666 = vmatpush1.msra.mxu0 0.0
          %667 = vmatprep.subr.mxu0 0.0
          %668 = vmatpush1.msra.mxu0 0.0
          %669 = vmatprep.subr.mxu0 0.0
          %670 = vmatpush1.msra.mxu0 0.0
          %671 = vmatprep.mubr.f32.mxu0 0.0
          %672 = vmatmul.mubr.f32.gmra.mrb[0].mxu0 %v599
          %v673 = vpop.f32.mrb[0].mxu0
          %v674 = vadd.f32 0.0, %v673
          %v675 = vpop.f32.mrb[0].mxu0
          %676 = vmatprep.mubr.f32.mxu0 0.0
          %677 = vmatmul.mubr.f32.gmra.mrb[0].mxu0 %v602
          %v678 = vpop.f32.mrb[0].mxu0
          %v679 = vadd.f32 0.0, %v678
          %v680 = vpop.f32.mrb[0].mxu0
          %681 = vdwg.mxu0
          %v682 = vadd.f32 %v590, %v674
          %v683 = vadd.f32 %v591, %v679
          %s684 = sadd.s32 %s220, 64
          %s685 = scalar_lea.vmem [#allocation2], %s684
          %v686 = vld [vmem:[%s685] sm:$0xff]
          %v687 = vld [vmem:[%s685 + $0x8] sm:$0xff]
          %s688 = scalar_lea.vmem [#allocation3], 16
          %v689 = vld [vmem:[%s688] sm:$0xf]
          %v691 = vsel %vm314, %v686, 0
          %v694 = vsel %vm314, %v687, 0
          %v697 = vsel %vm337, %v689, 0
          %699 = vmatprep.subr.mxu0 0.0
          %700 = vmatpush1.msra.mxu0 %v697
          %701 = vmatprep.subr.mxu0 0.0
          %702 = vmatpush1.msra.mxu0 0.0
          %703 = vmatprep.subr.mxu0 0.0
          %704 = vmatpush1.msra.mxu0 0.0
          %705 = vmatprep.subr.mxu0 0.0
          %706 = vmatpush1.msra.mxu0 0.0
          %707 = vmatprep.subr.mxu0 0.0
          %708 = vmatpush1.msra.mxu0 0.0
          %709 = vmatprep.subr.mxu0 0.0
          %710 = vmatpush1.msra.mxu0 0.0
          %711 = vmatprep.subr.mxu0 0.0
          %712 = vmatpush1.msra.mxu0 0.0
          %713 = vmatprep.subr.mxu0 0.0
          %714 = vmatpush1.msra.mxu0 0.0
          %715 = vmatprep.subr.mxu0 0.0
          %716 = vmatpush1.msra.mxu0 0.0
          %717 = vmatprep.subr.mxu0 0.0
          %718 = vmatpush1.msra.mxu0 0.0
          %719 = vmatprep.subr.mxu0 0.0
          %720 = vmatpush1.msra.mxu0 0.0
          %721 = vmatprep.subr.mxu0 0.0
          %722 = vmatpush1.msra.mxu0 0.0
          %723 = vmatprep.subr.mxu0 0.0
          %724 = vmatpush1.msra.mxu0 0.0
          %725 = vmatprep.subr.mxu0 0.0
          %726 = vmatpush1.msra.mxu0 0.0
          %727 = vmatprep.subr.mxu0 0.0
          %728 = vmatpush1.msra.mxu0 0.0
          %729 = vmatprep.subr.mxu0 0.0
          %730 = vmatpush1.msra.mxu0 0.0
          %731 = vmatprep.subr.mxu0 0.0
          %732 = vmatpush1.msra.mxu0 0.0
          %733 = vmatprep.subr.mxu0 0.0
          %734 = vmatpush1.msra.mxu0 0.0
          %735 = vmatprep.subr.mxu0 0.0
          %736 = vmatpush1.msra.mxu0 0.0
          %737 = vmatprep.subr.mxu0 0.0
          %738 = vmatpush1.msra.mxu0 0.0
          %739 = vmatprep.subr.mxu0 0.0
          %740 = vmatpush1.msra.mxu0 0.0
          %741 = vmatprep.subr.mxu0 0.0
          %742 = vmatpush1.msra.mxu0 0.0
          %743 = vmatprep.subr.mxu0 0.0
          %744 = vmatpush1.msra.mxu0 0.0
          %745 = vmatprep.subr.mxu0 0.0
          %746 = vmatpush1.msra.mxu0 0.0
          %747 = vmatprep.subr.mxu0 0.0
          %748 = vmatpush1.msra.mxu0 0.0
          %749 = vmatprep.subr.mxu0 0.0
          %750 = vmatpush1.msra.mxu0 0.0
          %751 = vmatprep.subr.mxu0 0.0
          %752 = vmatpush1.msra.mxu0 0.0
          %753 = vmatprep.subr.mxu0 0.0
          %754 = vmatpush1.msra.mxu0 0.0
          %755 = vmatprep.subr.mxu0 0.0
          %756 = vmatpush1.msra.mxu0 0.0
          %757 = vmatprep.subr.mxu0 0.0
          %758 = vmatpush1.msra.mxu0 0.0
          %759 = vmatprep.subr.mxu0 0.0
          %760 = vmatpush1.msra.mxu0 0.0
          %761 = vmatprep.subr.mxu0 0.0
          %762 = vmatpush1.msra.mxu0 0.0
          %763 = vmatprep.mubr.f32.mxu0 0.0
          %764 = vmatmul.mubr.f32.gmra.mrb[0].mxu0 %v691
          %v765 = vpop.f32.mrb[0].mxu0
          %v766 = vadd.f32 0.0, %v765
          %v767 = vpop.f32.mrb[0].mxu0
          %768 = vmatprep.mubr.f32.mxu0 0.0
          %769 = vmatmul.mubr.f32.gmra.mrb[0].mxu0 %v694
          %v770 = vpop.f32.mrb[0].mxu0
          %v771 = vadd.f32 0.0, %v770
          %v772 = vpop.f32.mrb[0].mxu0
          %773 = vdwg.mxu0
          %v774 = vadd.f32 %v682, %v766
          %v775 = vadd.f32 %v683, %v771
          %s776 = sadd.s32 %s220, 80
          %s777 = scalar_lea.vmem [#allocation2], %s776
          %v778 = vld [vmem:[%s777] sm:$0xff]
          %v779 = vld [vmem:[%s777 + $0x8] sm:$0xff]
          %s780 = scalar_lea.vmem [#allocation3], 20
          %v781 = vld [vmem:[%s780] sm:$0xf]
          %v783 = vsel %vm314, %v778, 0
          %v786 = vsel %vm314, %v779, 0
          %v789 = vsel %vm337, %v781, 0
          %791 = vmatprep.subr.mxu0 0.0
          %792 = vmatpush1.msra.mxu0 %v789
          %793 = vmatprep.subr.mxu0 0.0
          %794 = vmatpush1.msra.mxu0 0.0
          %795 = vmatprep.subr.mxu0 0.0
          %796 = vmatpush1.msra.mxu0 0.0
          %797 = vmatprep.subr.mxu0 0.0
          %798 = vmatpush1.msra.mxu0 0.0
          %799 = vmatprep.subr.mxu0 0.0
          %800 = vmatpush1.msra.mxu0 0.0
          %801 = vmatprep.subr.mxu0 0.0
          %802 = vmatpush1.msra.mxu0 0.0
          %803 = vmatprep.subr.mxu0 0.0
          %804 = vmatpush1.msra.mxu0 0.0
          %805 = vmatprep.subr.mxu0 0.0
          %806 = vmatpush1.msra.mxu0 0.0
          %807 = vmatprep.subr.mxu0 0.0
          %808 = vmatpush1.msra.mxu0 0.0
          %809 = vmatprep.subr.mxu0 0.0
          %810 = vmatpush1.msra.mxu0 0.0
          %811 = vmatprep.subr.mxu0 0.0
          %812 = vmatpush1.msra.mxu0 0.0
          %813 = vmatprep.subr.mxu0 0.0
          %814 = vmatpush1.msra.mxu0 0.0
          %815 = vmatprep.subr.mxu0 0.0
          %816 = vmatpush1.msra.mxu0 0.0
          %817 = vmatprep.subr.mxu0 0.0
          %818 = vmatpush1.msra.mxu0 0.0
          %819 = vmatprep.subr.mxu0 0.0
          %820 = vmatpush1.msra.mxu0 0.0
          %821 = vmatprep.subr.mxu0 0.0
          %822 = vmatpush1.msra.mxu0 0.0
          %823 = vmatprep.subr.mxu0 0.0
          %824 = vmatpush1.msra.mxu0 0.0
          %825 = vmatprep.subr.mxu0 0.0
          %826 = vmatpush1.msra.mxu0 0.0
          %827 = vmatprep.subr.mxu0 0.0
          %828 = vmatpush1.msra.mxu0 0.0
          %829 = vmatprep.subr.mxu0 0.0
          %830 = vmatpush1.msra.mxu0 0.0
          %831 = vmatprep.subr.mxu0 0.0
          %832 = vmatpush1.msra.mxu0 0.0
          %833 = vmatprep.subr.mxu0 0.0
          %834 = vmatpush1.msra.mxu0 0.0
          %835 = vmatprep.subr.mxu0 0.0
          %836 = vmatpush1.msra.mxu0 0.0
          %837 = vmatprep.subr.mxu0 0.0
          %838 = vmatpush1.msra.mxu0 0.0
          %839 = vmatprep.subr.mxu0 0.0
          %840 = vmatpush1.msra.mxu0 0.0
          %841 = vmatprep.subr.mxu0 0.0
          %842 = vmatpush1.msra.mxu0 0.0
          %843 = vmatprep.subr.mxu0 0.0
          %844 = vmatpush1.msra.mxu0 0.0
          %845 = vmatprep.subr.mxu0 0.0
          %846 = vmatpush1.msra.mxu0 0.0
          %847 = vmatprep.subr.mxu0 0.0
          %848 = vmatpush1.msra.mxu0 0.0
          %849 = vmatprep.subr.mxu0 0.0
          %850 = vmatpush1.msra.mxu0 0.0
          %851 = vmatprep.subr.mxu0 0.0
          %852 = vmatpush1.msra.mxu0 0.0
          %853 = vmatprep.subr.mxu0 0.0
          %854 = vmatpush1.msra.mxu0 0.0
          %855 = vmatprep.mubr.f32.mxu0 0.0
          %856 = vmatmul.mubr.f32.gmra.mrb[0].mxu0 %v783
          %v857 = vpop.f32.mrb[0].mxu0
          %v858 = vadd.f32 0.0, %v857
          %v859 = vpop.f32.mrb[0].mxu0
          %860 = vmatprep.mubr.f32.mxu0 0.0
          %861 = vmatmul.mubr.f32.gmra.mrb[0].mxu0 %v786
          %v862 = vpop.f32.mrb[0].mxu0
          %v863 = vadd.f32 0.0, %v862
          %v864 = vpop.f32.mrb[0].mxu0
          %865 = vdwg.mxu0
          %v866 = vadd.f32 %v774, %v858
          %v867 = vadd.f32 %v775, %v863
          %s868 = sadd.s32 %s220, 96
          %s869 = scalar_lea.vmem [#allocation2], %s868
          %v870 = vld [vmem:[%s869] sm:$0xff]
          %v871 = vld [vmem:[%s869 + $0x8] sm:$0xff]
          %s872 = scalar_lea.vmem [#allocation3], 24
          %v873 = vld [vmem:[%s872] sm:$0xf]
          %v875 = vsel %vm314, %v870, 0
          %v878 = vsel %vm314, %v871, 0
          %v881 = vsel %vm337, %v873, 0
          %883 = vmatprep.subr.mxu0 0.0
          %884 = vmatpush1.msra.mxu0 %v881
          %885 = vmatprep.subr.mxu0 0.0
          %886 = vmatpush1.msra.mxu0 0.0
          %887 = vmatprep.subr.mxu0 0.0
          %888 = vmatpush1.msra.mxu0 0.0
          %889 = vmatprep.subr.mxu0 0.0
          %890 = vmatpush1.msra.mxu0 0.0
          %891 = vmatprep.subr.mxu0 0.0
          %892 = vmatpush1.msra.mxu0 0.0
          %893 = vmatprep.subr.mxu0 0.0
          %894 = vmatpush1.msra.mxu0 0.0
          %895 = vmatprep.subr.mxu0 0.0
          %896 = vmatpush1.msra.mxu0 0.0
          %897 = vmatprep.subr.mxu0 0.0
          %898 = vmatpush1.msra.mxu0 0.0
          %899 = vmatprep.subr.mxu0 0.0
          %900 = vmatpush1.msra.mxu0 0.0
          %901 = vmatprep.subr.mxu0 0.0
          %902 = vmatpush1.msra.mxu0 0.0
          %903 = vmatprep.subr.mxu0 0.0
          %904 = vmatpush1.msra.mxu0 0.0
          %905 = vmatprep.subr.mxu0 0.0
          %906 = vmatpush1.msra.mxu0 0.0
          %907 = vmatprep.subr.mxu0 0.0
          %908 = vmatpush1.msra.mxu0 0.0
          %909 = vmatprep.subr.mxu0 0.0
          %910 = vmatpush1.msra.mxu0 0.0
          %911 = vmatprep.subr.mxu0 0.0
          %912 = vmatpush1.msra.mxu0 0.0
          %913 = vmatprep.subr.mxu0 0.0
          %914 = vmatpush1.msra.mxu0 0.0
          %915 = vmatprep.subr.mxu0 0.0
          %916 = vmatpush1.msra.mxu0 0.0
          %917 = vmatprep.subr.mxu0 0.0
          %918 = vmatpush1.msra.mxu0 0.0
          %919 = vmatprep.subr.mxu0 0.0
          %920 = vmatpush1.msra.mxu0 0.0
          %921 = vmatprep.subr.mxu0 0.0
          %922 = vmatpush1.msra.mxu0 0.0
          %923 = vmatprep.subr.mxu0 0.0
          %924 = vmatpush1.msra.mxu0 0.0
          %925 = vmatprep.subr.mxu0 0.0
          %926 = vmatpush1.msra.mxu0 0.0
          %927 = vmatprep.subr.mxu0 0.0
          %928 = vmatpush1.msra.mxu0 0.0
          %929 = vmatprep.subr.mxu0 0.0
          %930 = vmatpush1.msra.mxu0 0.0
          %931 = vmatprep.subr.mxu0 0.0
          %932 = vmatpush1.msra.mxu0 0.0
          %933 = vmatprep.subr.mxu0 0.0
          %934 = vmatpush1.msra.mxu0 0.0
          %935 = vmatprep.subr.mxu0 0.0
          %936 = vmatpush1.msra.mxu0 0.0
          %937 = vmatprep.subr.mxu0 0.0
          %938 = vmatpush1.msra.mxu0 0.0
          %939 = vmatprep.subr.mxu0 0.0
          %940 = vmatpush1.msra.mxu0 0.0
          %941 = vmatprep.subr.mxu0 0.0
          %942 = vmatpush1.msra.mxu0 0.0
          %943 = vmatprep.subr.mxu0 0.0
          %944 = vmatpush1.msra.mxu0 0.0
          %945 = vmatprep.subr.mxu0 0.0
          %946 = vmatpush1.msra.mxu0 0.0
          %947 = vmatprep.mubr.f32.mxu0 0.0
          %948 = vmatmul.mubr.f32.gmra.mrb[0].mxu0 %v875
          %v949 = vpop.f32.mrb[0].mxu0
          %v950 = vadd.f32 0.0, %v949
          %v951 = vpop.f32.mrb[0].mxu0
          %952 = vmatprep.mubr.f32.mxu0 0.0
          %953 = vmatmul.mubr.f32.gmra.mrb[0].mxu0 %v878
          %v954 = vpop.f32.mrb[0].mxu0
          %v955 = vadd.f32 0.0, %v954
          %v956 = vpop.f32.mrb[0].mxu0
          %957 = vdwg.mxu0
          %v958 = vadd.f32 %v866, %v950
          %v959 = vadd.f32 %v867, %v955
          %s960 = sadd.s32 %s220, 112
          %s961 = scalar_lea.vmem [#allocation2], %s960
          %v962 = vld [vmem:[%s961] sm:$0xff]
          %v963 = vld [vmem:[%s961 + $0x8] sm:$0xff]
          %s964 = scalar_lea.vmem [#allocation3], 28
          %v965 = vld [vmem:[%s964] sm:$0xf]
          %v967 = vsel %vm314, %v962, 0
          %v970 = vsel %vm314, %v963, 0
          %v973 = vsel %vm337, %v965, 0
          %975 = vmatprep.subr.mxu0 0.0
          %976 = vmatpush1.msra.mxu0 %v973
          %977 = vmatprep.subr.mxu0 0.0
          %978 = vmatpush1.msra.mxu0 0.0
          %979 = vmatprep.subr.mxu0 0.0
          %980 = vmatpush1.msra.mxu0 0.0
          %981 = vmatprep.subr.mxu0 0.0
          %982 = vmatpush1.msra.mxu0 0.0
          %983 = vmatprep.subr.mxu0 0.0
          %984 = vmatpush1.msra.mxu0 0.0
          %985 = vmatprep.subr.mxu0 0.0
          %986 = vmatpush1.msra.mxu0 0.0
          %987 = vmatprep.subr.mxu0 0.0
          %988 = vmatpush1.msra.mxu0 0.0
          %989 = vmatprep.subr.mxu0 0.0
          %990 = vmatpush1.msra.mxu0 0.0
          %991 = vmatprep.subr.mxu0 0.0
          %992 = vmatpush1.msra.mxu0 0.0
          %993 = vmatprep.subr.mxu0 0.0
          %994 = vmatpush1.msra.mxu0 0.0
          %995 = vmatprep.subr.mxu0 0.0
          %996 = vmatpush1.msra.mxu0 0.0
          %997 = vmatprep.subr.mxu0 0.0
          %998 = vmatpush1.msra.mxu0 0.0
          %999 = vmatprep.subr.mxu0 0.0
          %1000 = vmatpush1.msra.mxu0 0.0
          %1001 = vmatprep.subr.mxu0 0.0
          %1002 = vmatpush1.msra.mxu0 0.0
          %1003 = vmatprep.subr.mxu0 0.0
          %1004 = vmatpush1.msra.mxu0 0.0
          %1005 = vmatprep.subr.mxu0 0.0
          %1006 = vmatpush1.msra.mxu0 0.0
          %1007 = vmatprep.subr.mxu0 0.0
          %1008 = vmatpush1.msra.mxu0 0.0
          %1009 = vmatprep.subr.mxu0 0.0
          %1010 = vmatpush1.msra.mxu0 0.0
          %1011 = vmatprep.subr.mxu0 0.0
          %1012 = vmatpush1.msra.mxu0 0.0
          %1013 = vmatprep.subr.mxu0 0.0
          %1014 = vmatpush1.msra.mxu0 0.0
          %1015 = vmatprep.subr.mxu0 0.0
          %1016 = vmatpush1.msra.mxu0 0.0
          %1017 = vmatprep.subr.mxu0 0.0
          %1018 = vmatpush1.msra.mxu0 0.0
          %1019 = vmatprep.subr.mxu0 0.0
          %1020 = vmatpush1.msra.mxu0 0.0
          %1021 = vmatprep.subr.mxu0 0.0
          %1022 = vmatpush1.msra.mxu0 0.0
          %1023 = vmatprep.subr.mxu0 0.0
          %1024 = vmatpush1.msra.mxu0 0.0
          %1025 = vmatprep.subr.mxu0 0.0
          %1026 = vmatpush1.msra.mxu0 0.0
          %1027 = vmatprep.subr.mxu0 0.0
          %1028 = vmatpush1.msra.mxu0 0.0
          %1029 = vmatprep.subr.mxu0 0.0
          %1030 = vmatpush1.msra.mxu0 0.0
          %1031 = vmatprep.subr.mxu0 0.0
          %1032 = vmatpush1.msra.mxu0 0.0
          %1033 = vmatprep.subr.mxu0 0.0
          %1034 = vmatpush1.msra.mxu0 0.0
          %1035 = vmatprep.subr.mxu0 0.0
          %1036 = vmatpush1.msra.mxu0 0.0
          %1037 = vmatprep.subr.mxu0 0.0
          %1038 = vmatpush1.msra.mxu0 0.0
          %1039 = vmatprep.mubr.f32.mxu0 0.0
          %1040 = vmatmul.mubr.f32.gmra.mrb[0].mxu0 %v967
          %v1041 = vpop.f32.mrb[0].mxu0
          %v1042 = vadd.f32 0.0, %v1041
          %v1043 = vpop.f32.mrb[0].mxu0
          %1044 = vmatprep.mubr.f32.mxu0 0.0
          %1045 = vmatmul.mubr.f32.gmra.mrb[0].mxu0 %v970
          %v1046 = vpop.f32.mrb[0].mxu0
          %v1047 = vadd.f32 0.0, %v1046
          %v1048 = vpop.f32.mrb[0].mxu0
          %1049 = vdwg.mxu0
          %v1050 = vadd.f32 %v958, %v1042
          %v1051 = vadd.f32 %v959, %v1047
          %v1052 = vld [vmem:[%s3] sm:$0x1]
          %v1054 = vlaneseq
          %v1055 = vshrl.u32 %v1054, 7
          %v1056 = vsub.s32 0, %v1055
          %v1057 = vrot.slane %v1052, %v1056
          %v1059 = vadd.f32 %v1050, %v1057
          %v1060 = vadd.f32 %v1051, %v1057
          %v1061 = vmax.f32 %v1059, 0.0
          %v1062 = vmax.f32 %v1060, 0.0
          %1063 = vst [vmem:[#allocation6] sm:$0xff] %v1061
          %1064 = vst [vmem:[#allocation6 + $0x8] sm:$0xff] %v1062
        $region48: #{tpu_custom_call.1} parent=35 // pred_fallthru
          _
        // Predicated region
        $region49: #{tpu_custom_call.1} parent=35 // pred_check
          %p1065 = pneg %p136
        $region50: #{tpu_custom_call.1} parent=35 // pred_check_branch
          %1067 = sbr.rel (%p1065) target = $region52
        $region51: #{tpu_custom_call.1} parent=35 // pred_region
          %s1068 = smul.u32 2, %s22
          %s1070 = ssub.s32 256, 256
          %1071 = vsyncadd [#allocation5], %s1070
          %s1072 = smul.addr %s1068, 128
          %s1073 = scalar_lea.hbm %s4, %s1072
          %s1074 = sshll.u32 [#allocation6], 4
          %s1075 = int_to_ptr.vmem [resolvable:$true] %s1074
          %1080 = dma.vmem_to_hbm [thread:$0]  %s1075, 256, %s1073, [#allocation5], 128, 128, 8
        $region52: #{tpu_custom_call.1} parent=35 // pred_fallthru
          _
        // Predicated region
        $region53: #{tpu_custom_call.1} parent=35 // pred_check
          %p1081 = pneg %p136
        $region54: #{tpu_custom_call.1} parent=35 // pred_check_branch
          %1083 = sbr.rel (%p1081) target = $region56
        $region55: #{tpu_custom_call.1} parent=35 // pred_region
          %1084 = dma.done [#allocation5], 256
        $region56: #{tpu_custom_call.1} parent=35 // pred_fallthru
          _
      $region36: #{tpu_custom_call.1} parent=5 // pred_fallthru
        _
      %p1085 = scmp.le.s32.totalorder 2, %s12
      // Predicated region
      $region57: #{tpu_custom_call.1} parent=5 // pred_check
        %p1086 = pneg %p1085
      $region58: #{tpu_custom_call.1} parent=5 // pred_check_branch
        %1088 = sbr.rel (%p1086) target = $region60
      $region59: #{tpu_custom_call.1} parent=5 // pred_region
        %s1089 = ssub.s32 %s12, 2
      $region60: #{tpu_custom_call.1} parent=5 // pred_fallthru
        _
    $region6: #{tpu_custom_call.1} parent=1 // loop_footer
      %s16 = sadd.s32 1, %s12
    $region7: #{tpu_custom_call.1} parent=1 // loop_footer_branch
      %11 = sbr.rel target = $region3
    $region8: #{tpu_custom_call.1} parent=1 // loop_exit
      _
    %1090 = vsyncpa [#allocation4], 1
    %s1091 = scalar_lea.sflag [#allocation4], 1
    %1092 = vsyncpa %s1091, 1
    %1093 = vsyncpa [#allocation5], 1
    %s1094 = scalar_lea.sflag [#allocation5], 1
    %1095 = vsyncpa %s1094, 1

</llo_original>
